<compile_context>
chip_gen: v6e
topology: v6e:2x2x1
jax: 0.10.0
libtpu: 0.0.40
codegen_flags: <defaults>
</compile_context>

<pallas_src>
import functools

import jax
import jax.numpy as jnp
from jax.experimental import pallas as pl
from jax.experimental.pallas import tpu as pltpu


def _round_up(v, m):
    return (v + m - 1) // m * m


def _choose_tm(total_m, n_pad, sublane=16, cap=512):
    """Pick the M tile: a multiple of `sublane` that is either a divisor of
    n_pad (tile = contiguous slice of one image) or a multiple of n_pad
    (tile spans whole images).  Prefer the largest tile <= cap that still
    leaves >= 2 grid steps (so v7x megacore can split the M axis)."""
    cands = set()
    t = sublane
    while t <= n_pad:
        if n_pad % t == 0:
            cands.add(t)
        t += sublane
    q = 1
    while q * n_pad <= min(total_m, cap):
        if total_m % (q * n_pad) == 0:
            cands.add(q * n_pad)
        q += 1
    cands = sorted(c for c in cands if c <= min(cap, total_m))
    if not cands:
        return min(n_pad, total_m)
    multi = [c for c in cands if total_m // c >= 2]
    return (multi or cands)[-1]


def _patch_embed_kernel(p_ref, w_ref, a_ref, o_ref, *, m_per_image, tm):
    """One grid step: o = p @ w + addend (single MXU pass, K/E fully resident).

    p_ref: (tm, K_pad)      flattened-patch tile (streamed per grid step)
    w_ref: (K_pad, E_pad)   reshaped conv weight (VMEM-resident, constant idx)
    a_ref: (A, E_pad) f32   fused bias + pos_embed[1:] (VMEM-resident)
    o_ref: (tm, E_pad)      output tile
    """
    acc = jnp.dot(p_ref[...], w_ref[...], preferred_element_type=jnp.float32)
    if m_per_image == 1:
        addend = a_ref[...]                       # tile rows == addend rows
    else:
        row = pl.multiple_of((pl.program_id(0) % m_per_image) * tm, tm)
        addend = a_ref[pl.ds(row, tm), :]
    o_ref[...] = (acc + addend).astype(o_ref.dtype)


@functools.partial(jax.jit, static_argnames=("patch_size", "matmul_dtype"))
def patch_embed_super(x, weight, bias, cls_token, pos_embed, *, patch_size,
                      matmul_dtype=jnp.bfloat16):
    """x: (B, C, H, W) NCHW.  weight: (E, C, ph, pw) OIHW.  bias: (E,).
    cls_token: (1, 1, E).  pos_embed: (1, N+1, E).   Returns (B, N+1, E)."""
    B, C, H, W = x.shape
    E = weight.shape[0]
    ph = pw = patch_size
    nh, nw = H // ph, W // pw
    N = nh * nw
    K = C * ph * pw

    in_dtype = x.dtype if matmul_dtype is None else jnp.dtype(matmul_dtype)

    # Lane/sublane-friendly padding: K, E -> multiples of 128; N -> multiple
    # of 16 (bf16 sublane packing; also fine for f32).
    K_pad = _round_up(K, 128)
    E_pad = _round_up(E, 128)
    N_pad = _round_up(N, 16)

    # --- glue: non-overlapping patch extraction; (c, ph, pw) flattening order
    # matches the OIHW conv-weight flattening.  allow_input_fusion below lets
    # XLA fold this transpose/pad/cast into the kernel's operand fetch.
    # TODO(synk): pull the patch gather fully in-kernel (BlockSpec over
    # (b, nh) of x viewed as (B, C, nh, ph, nw, pw)) to guarantee zero HBM
    # materialization independent of XLA fusion decisions.
    x = x[:, :, :nh * ph, :nw * pw]
    patches = x.reshape(B, C, nh, ph, nw, pw)
    patches = patches.transpose(0, 2, 4, 1, 3, 5).reshape(B, N, K)
    patches = jnp.pad(patches, ((0, 0), (0, N_pad - N), (0, K_pad - K)))
    patches = patches.reshape(B * N_pad, K_pad).astype(in_dtype)

    # Reshaped conv weight (K_pad, E_pad): fetched once, VMEM-resident.
    w2d = jnp.pad(weight.reshape(E, K).T, ((0, K_pad - K), (0, E_pad - E)))
    w2d = w2d.astype(in_dtype)

    # Fused (bias + pos_embed[1:]) addend, batch-independent, kept f32.
    addend = (bias[None, :].astype(jnp.float32)
              + pos_embed[0, 1:, :].astype(jnp.float32))
    addend = jnp.pad(addend, ((0, N_pad - N), (0, E_pad - E)))

    # M tile selection (1-D grid over M only).
    tm = _choose_tm(B * N_pad, N_pad, sublane=16, cap=512)
    if tm >= N_pad:                       # one tile spans q whole images
        q = tm // N_pad
        addend_res = jnp.tile(addend, (q, 1)) if q > 1 else addend
        m_per_image = 1
    else:                                 # tile is a slice of one image
        addend_res = addend
        m_per_image = N_pad // tm
    A = addend_res.shape[0]
    num_m = (B * N_pad) // tm

    # Explicit scoped-VMEM budget (v5e default is only 16 MiB; v7x physical
    # VMEM is 64 MiB — stay within it).
    in_bytes = jnp.dtype(in_dtype).itemsize
    out_bytes = jnp.dtype(x.dtype).itemsize
    vmem_est = (2 * tm * K_pad * in_bytes        # patch tile, double-buffered
                + 2 * tm * E_pad * out_bytes     # output tile, double-buffered
                + 2 * K_pad * E_pad * in_bytes   # resident weight (conservative)
                + 2 * A * E_pad * 4)             # resident addend (f32)
    vmem_limit = min(max(int(vmem_est * 3 // 2), 32 * 1024 * 1024),
                     64 * 1024 * 1024)

    kernel = functools.partial(_patch_embed_kernel,
                               m_per_image=m_per_image, tm=tm)

    out_flat = pl.pallas_call(
        kernel,
        out_shape=jax.ShapeDtypeStruct((B * N_pad, E_pad), x.dtype),
        grid=(num_m,),
        in_specs=[
            pl.BlockSpec((tm, K_pad), lambda i: (i, 0)),     # patches (streamed)
            pl.BlockSpec((K_pad, E_pad), lambda i: (0, 0)),  # weight (resident)
            pl.BlockSpec((A, E_pad), lambda i: (0, 0)),      # bias+pos (resident)
        ],
        out_specs=pl.BlockSpec((tm, E_pad), lambda i: (i, 0)),
        compiler_params=pltpu.CompilerParams(
            dimension_semantics=("parallel",),
            allow_input_fusion=[True, False, False],
            vmem_limit_bytes=vmem_limit),
    )(patches, w2d, addend_res)

    out_patches = out_flat.reshape(B, N_pad, E_pad)[:, :N, :E]

    # cls row (batch-independent), prepended outside the kernel.
    cls_row = (cls_token.reshape(1, 1, E).astype(jnp.float32)
               + pos_embed[:, 0:1, :].astype(jnp.float32)).astype(x.dtype)
    cls_rows = jnp.broadcast_to(cls_row, (B, 1, E))

    # dropout p=0 in the reference forward -> identity.
    return jnp.concatenate([cls_rows, out_patches], axis=1)


def _reference(x, weight, bias, cls_token, pos_embed, patch_size):
    """Pure-JAX reference mirroring the PyTorch forward (high precision)."""
    B = x.shape[0]
    E = weight.shape[0]
    y = jax.lax.conv_general_dilated(
        x, weight, window_strides=(patch_size, patch_size), padding="VALID",
        dimension_numbers=("NCHW", "OIHW", "NCHW"),
        precision=jax.lax.Precision.HIGHEST)
    y = y + bias.reshape(1, -1, 1, 1)
    y = y.reshape(B, E, -1).transpose(0, 2, 1)              # (B, N, E)
    cls = jnp.broadcast_to(cls_token, (B, 1, E))
    y = jnp.concatenate([cls, y], axis=1)
    y = y + pos_embed
    return y  # dropout p=0 -> identity


if __name__ == "__main__":
    # Small config consistent with the module: img_size=16, patch_size=2,
    # in_chans=4, embed_dim=32  ->  num_patches = 64, K = 16.
    B, C, H, W = 2, 4, 16, 16
    patch_size = 2
    embed_dim = 32
    num_patches = (H // patch_size) * (W // patch_size)

    key = jax.random.PRNGKey(0)
    kx, kw, kb, kc, kp = jax.random.split(key, 5)

    x = jax.random.normal(kx, (B, C, H, W), dtype=jnp.float32)
    weight = jax.random.normal(
        kw, (embed_dim, C, patch_size, patch_size), dtype=jnp.float32) * 0.05
    bias = jax.random.normal(kb, (embed_dim,), dtype=jnp.float32) * 0.05
    cls_token = 0.02 * jax.random.truncated_normal(
        kc, -2.0, 2.0, (1, 1, embed_dim), dtype=jnp.float32)
    pos_embed = 0.02 * jax.random.truncated_normal(
        kp, -2.0, 2.0, (1, num_patches + 1, embed_dim), dtype=jnp.float32)

    ref = _reference(x, weight, bias, cls_token, pos_embed, patch_size)

    # f32 MXU-input path.  Tolerance covers any MXU f32 pass decomposition;
    # structural bugs would produce O(0.1) errors.
    out_f32 = patch_embed_super(x, weight, bias, cls_token, pos_embed,
                                patch_size=patch_size,
                                matmul_dtype=jnp.float32)
    out_f32 = jax.block_until_ready(out_f32)
    assert out_f32.shape == (B, num_patches + 1, embed_dim), out_f32.shape
    assert jnp.allclose(out_f32, ref, atol=1e-3, rtol=1e-2), (
        float(jnp.max(jnp.abs(out_f32 - ref))))

    # Default bf16-input MXU path (f32 accumulation) — native on v5e/v6e/v7x.
    out_bf16 = patch_embed_super(x, weight, bias, cls_token, pos_embed,
                                 patch_size=patch_size)
    out_bf16 = jax.block_until_ready(out_bf16)
    assert out_bf16.shape == (B, num_patches + 1, embed_dim), out_bf16.shape
    assert jnp.allclose(out_bf16, ref, atol=2e-2, rtol=0), (
        float(jnp.max(jnp.abs(out_bf16 - ref))))

    print("KERNEL_OK")
</pallas_src>

<mosaic_0001>
module attributes {stable_mosaic.version = 11 : i64} {
  func.func @_patch_embed_kernel(%arg0: i32, %arg1: memref<64x128xf32, #tpu.memory_space<vmem>>, %arg2: memref<128x128xf32, #tpu.memory_space<vmem>>, %arg3: memref<64x128xf32, #tpu.memory_space<vmem>>, %arg4: memref<64x128xf32, #tpu.memory_space<vmem>>) attributes {dimension_semantics = [#tpu.dimension_semantics<parallel>], iteration_bounds = array<i64: 2>, scalar_prefetch = 0 : i64, scratch_operands = 0 : i64, tpu.core_type = #tpu.core_type<tc>, window_params = [{transform_indices = @transform_0, window_bounds = array<i64: 64, 128>}, {pipeline_mode = #tpu.pipeline_mode<synchronous>, transform_indices = @transform_1, window_bounds = array<i64: 128, 128>}, {pipeline_mode = #tpu.pipeline_mode<synchronous>, transform_indices = @transform_2, window_bounds = array<i64: 64, 128>}, {transform_indices = @transform_3, window_bounds = array<i64: 64, 128>}]} {
    %c0 = arith.constant 0 : index
    %c0_0 = arith.constant 0 : index
    %0 = vector.load %arg1[%c0, %c0_0] : memref<64x128xf32, #tpu.memory_space<vmem>>, vector<64x128xf32>
    %c0_1 = arith.constant 0 : index
    %c0_2 = arith.constant 0 : index
    %1 = vector.load %arg2[%c0_1, %c0_2] : memref<128x128xf32, #tpu.memory_space<vmem>>, vector<128x128xf32>
    %cst = arith.constant dense<0.000000e+00> : vector<64x128xf32>
    %2 = tpu.matmul %0, %1, %cst {dimension_numbers = #tpu.dot_dimension_numbers<[1], [0], [0], [1], [0, 0, 1, 1], [], []>} : vector<64x128xf32>, vector<128x128xf32>, vector<64x128xf32> -> vector<64x128xf32>
    %c0_3 = arith.constant 0 : index
    %c0_4 = arith.constant 0 : index
    %3 = vector.load %arg3[%c0_3, %c0_4] : memref<64x128xf32, #tpu.memory_space<vmem>>, vector<64x128xf32>
    %4 = arith.addf %2, %3 : vector<64x128xf32>
    %c0_5 = arith.constant 0 : index
    %c0_6 = arith.constant 0 : index
    %5 = vector.load %arg4[%c0_5, %c0_6] : memref<64x128xf32, #tpu.memory_space<vmem>>, vector<64x128xf32>
    tpu.vector_store %arg4[%c0_5, %c0_6], %4 {strides = array<i32>} : memref<64x128xf32, #tpu.memory_space<vmem>>, vector<64x128xf32>,
    return
  }
  func.func @transform_0(%arg0: i32) -> (i32, i32) {
    %c0_i32 = arith.constant 0 : i32
    %c0_i32_0 = arith.constant 0 : i32
    return %arg0, %c0_i32 : i32, i32
  }
  func.func @transform_1(%arg0: i32) -> (i32, i32) {
    %c0_i32 = arith.constant 0 : i32
    %c0_i32_0 = arith.constant 0 : i32
    %c0_i32_1 = arith.constant 0 : i32
    return %c0_i32, %c0_i32_0 : i32, i32
  }
  func.func @transform_2(%arg0: i32) -> (i32, i32) {
    %c0_i32 = arith.constant 0 : i32
    %c0_i32_0 = arith.constant 0 : i32
    %c0_i32_1 = arith.constant 0 : i32
    return %c0_i32, %c0_i32_0 : i32, i32
  }
  func.func @transform_3(%arg0: i32) -> (i32, i32) {
    %c0_i32 = arith.constant 0 : i32
    %c0_i32_0 = arith.constant 0 : i32
    return %arg0, %c0_i32 : i32, i32
  }
}

</mosaic_0001>

<llo_original>
// kernel: patch_embed_super.1
$region0: #{patch_embed_super.1}
  #allocation0 [shape = 'u32[]', space=smem, size = 0x4, offset = 0x4, fixed_abs, tag = 'smem constant byte address 0x4 - core index']
  #allocation1 [shape = 'u32[144,128]{1,0:T(1,128)}', space=vmem, size = 0x12000, scoped, tag = 'internal scratch']
  %s0 = inlined_call_operand.vmem [shape: f32[128,128], index: 0, kind: input, shape index: {}]
  %s1 = inlined_call_operand.vmem [shape: f32[128,128], index: 1, kind: input, shape index: {}]
  %s2 = inlined_call_operand.vmem [shape: f32[64,128], index: 2, kind: input, shape index: {}]
  %s3 = inlined_call_operand.vmem [shape: f32[128,128], index: 3, kind: output, shape index: {}]
  %s4 = sld [smem:[#allocation0]]
  $region45: #{patch_embed_super.1} parent=0
    _
  %s6 = ssub.s32 1, %s4
  %s7 = scalar_select 0, %s6, %s4
  loop: start=0, step=1, limit=4
  $region2: #{patch_embed_super.1} parent=0 // loop_pre_header
    _
  $region3: #{patch_embed_super.1} parent=0 // loop_header
    %s9 = sphi 0, %s13
    %p10 = scmp.ge.s32.totalorder %s9, 4
    %s19 = sphi 0, %s21
    %s22 = sphi 0, %s19
    %s23 = sphi 0, %s22
    %s39 = sphi 0, %s23
    %s43 = sphi 0, %s43
    %s45 = sphi 0, %s43
    %s46 = sphi 0, %s45
    %s60 = sphi 0, %s46
    %s64 = sphi 0, %s64
    %s66 = sphi 0, %s64
    %s67 = sphi 0, %s66
    %s81 = sphi 0, %s67
    %s87 = sphi 0, %s89
    %s90 = sphi 0, %s87
    %s91 = sphi 0, %s90
    %s107 = sphi 0, %s91
  $region4: #{patch_embed_super.1} parent=0 // loop_header_branch
    %12 = sbr.rel (%p10) target = $region8
  $region5: #{patch_embed_super.1} parent=0 // loop_body
    %s14 = ssub.s32 %s9, 1
    %s15 = ssub.s32 %s9, 2
    %s16 = sadd.s32 %s9, 1
    %s17 = ssub.s32 %s9, %s16
    %p18 = scmp.eq.s32.totalorder %s17, 0
    %s20 = sadd.s32 %s19, 1
    %s21 = scalar_select %p18, %s19, %s20
    %p24 = pneg %p18
    %p25 = scmp.eq.s32.totalorder %s9, 1
    %p26 = por %p24, %p25
    %p27 = scmp.ne.s32.totalorder %s19, %s22
    %p28 = scmp.eq.s32.totalorder %s9, 0
    %p29 = por %p27, %p28
    %p30 = scmp.ne.s32.totalorder %s19, %s22
    %p31 = scmp.eq.s32.totalorder %s14, 1
    %p32 = por %p30, %p31
    %p33 = scmp.ne.s32.totalorder %s22, %s23
    %p34 = scmp.eq.s32.totalorder %s14, 0
    %p35 = por %p33, %p34
    %p36 = scmp.ne.s32.totalorder %s22, %s23
    %p37 = scmp.eq.s32.totalorder %s15, 1
    %p38 = por %p36, %p37
    %p40 = scmp.ne.s32.totalorder %s23, %s39
    %p41 = scmp.eq.s32.totalorder %s15, 0
    %p42 = por %p40, %p41
    %s44 = sadd.s32 %s43, 1
    %p47 = scmp.eq.s32.totalorder %s9, 1
    %p48 = scmp.ne.s32.totalorder %s43, %s45
    %p49 = scmp.eq.s32.totalorder %s9, 0
    %p50 = por %p48, %p49
    %p51 = scmp.ne.s32.totalorder %s43, %s45
    %p52 = scmp.eq.s32.totalorder %s14, 1
    %p53 = por %p51, %p52
    %p54 = scmp.ne.s32.totalorder %s45, %s46
    %p55 = scmp.eq.s32.totalorder %s14, 0
    %p56 = por %p54, %p55
    %p57 = scmp.ne.s32.totalorder %s45, %s46
    %p58 = scmp.eq.s32.totalorder %s15, 1
    %p59 = por %p57, %p58
    %p61 = scmp.ne.s32.totalorder %s46, %s60
    %p62 = scmp.eq.s32.totalorder %s15, 0
    %p63 = por %p61, %p62
    %s65 = sadd.s32 %s64, 1
    %p68 = scmp.eq.s32.totalorder %s9, 1
    %p69 = scmp.ne.s32.totalorder %s64, %s66
    %p70 = scmp.eq.s32.totalorder %s9, 0
    %p71 = por %p69, %p70
    %p72 = scmp.ne.s32.totalorder %s64, %s66
    %p73 = scmp.eq.s32.totalorder %s14, 1
    %p74 = por %p72, %p73
    %p75 = scmp.ne.s32.totalorder %s66, %s67
    %p76 = scmp.eq.s32.totalorder %s14, 0
    %p77 = por %p75, %p76
    %p78 = scmp.ne.s32.totalorder %s66, %s67
    %p79 = scmp.eq.s32.totalorder %s15, 1
    %p80 = por %p78, %p79
    %p82 = scmp.ne.s32.totalorder %s67, %s81
    %p83 = scmp.eq.s32.totalorder %s15, 0
    %p84 = por %p82, %p83
    %s85 = ssub.s32 %s9, %s16
    %p86 = scmp.eq.s32.totalorder %s85, 0
    %s88 = sadd.s32 %s87, 1
    %s89 = scalar_select %p86, %s87, %s88
    %p92 = pneg %p86
    %p93 = scmp.eq.s32.totalorder %s9, 1
    %p94 = por %p92, %p93
    %p95 = scmp.ne.s32.totalorder %s87, %s90
    %p96 = scmp.eq.s32.totalorder %s9, 0
    %p97 = por %p95, %p96
    %p98 = scmp.ne.s32.totalorder %s87, %s90
    %p99 = scmp.eq.s32.totalorder %s14, 1
    %p100 = por %p98, %p99
    %p101 = scmp.ne.s32.totalorder %s90, %s91
    %p102 = scmp.eq.s32.totalorder %s14, 0
    %p103 = por %p101, %p102
    %p104 = scmp.ne.s32.totalorder %s90, %s91
    %p105 = scmp.eq.s32.totalorder %s15, 1
    %p106 = por %p104, %p105
    %p108 = scmp.ne.s32.totalorder %s91, %s107
    %p109 = scmp.eq.s32.totalorder %s15, 0
    %p110 = por %p108, %p109
    %p111 = scmp.le.s32.totalorder 1, %s9
    %p112 = scmp.lt.s32.totalorder %s9, 3
    %p113 = pnand %p111, %p112
    %p114 = pneg %p113
    // Predicated region
    $region9: #{patch_embed_super.1} parent=5 // pred_check
      _
    $region10: #{patch_embed_super.1} parent=5 // pred_check_branch
      %116 = sbr.rel (%p113) target = $region12
    $region11: #{patch_embed_super.1} parent=5 // pred_region
      %s117 = ssub.s32 %s9, 1
      // Predicated region
      $region13: #{patch_embed_super.1} parent=11 // pred_check
        %p118 = pneg %p56
      $region14: #{patch_embed_super.1} parent=11 // pred_check_branch
        %120 = sbr.rel (%p118) target = $region16
      $region15: #{patch_embed_super.1} parent=11 // pred_region
        _
      $region16: #{patch_embed_super.1} parent=11 // pred_fallthru
        _
      // Predicated region
      $region17: #{patch_embed_super.1} parent=11 // pred_check
        %p121 = pneg %p77
      $region18: #{patch_embed_super.1} parent=11 // pred_check_branch
        %123 = sbr.rel (%p121) target = $region20
      $region19: #{patch_embed_super.1} parent=11 // pred_region
        _
      $region20: #{patch_embed_super.1} parent=11 // pred_fallthru
        _
    $region12: #{patch_embed_super.1} parent=5 // pred_fallthru
      _
    %p124 = scmp.lt.s32.totalorder %s9, 2
    // Predicated region
    $region21: #{patch_embed_super.1} parent=5 // pred_check
      %p125 = pneg %p124
    $region22: #{patch_embed_super.1} parent=5 // pred_check_branch
      %127 = sbr.rel (%p125) target = $region24
    $region23: #{patch_embed_super.1} parent=5 // pred_region
      // Predicated region
      $region25: #{patch_embed_super.1} parent=23 // pred_check
        %p128 = pneg %p29
      $region26: #{patch_embed_super.1} parent=23 // pred_check_branch
        %130 = sbr.rel (%p128) target = $region28
      $region27: #{patch_embed_super.1} parent=23 // pred_region
        %s131 = smul.u32 8, %s9
        %p132 = scmp.lt.s32.totalorder %s131, 15
        %s133 = scalar_select %p132, %s131, 15
        %s134 = smul.addr %s133, 8
        %s135 = scalar_lea.vmem %s0, %s134
        %s136 = smul.u32 8, %s9
      $region28: #{patch_embed_super.1} parent=23 // pred_fallthru
        _
    $region24: #{patch_embed_super.1} parent=5 // pred_fallthru
      _
    %p137 = scmp.le.s32.totalorder 1, %s9
    %p138 = scmp.lt.s32.totalorder %s9, 3
    %p139 = pnand %p137, %p138
    %p140 = pneg %p139
    // Predicated region
    $region29: #{patch_embed_super.1} parent=5 // pred_check
      _
    $region30: #{patch_embed_super.1} parent=5 // pred_check_branch
      %142 = sbr.rel (%p139) target = $region32
    $region31: #{patch_embed_super.1} parent=5 // pred_region
      %s143 = ssub.s32 %s9, 1
      %s144 = smul.u32 8, %s14
      %p145 = scmp.lt.s32.totalorder %s144, 15
      %s146 = scalar_select %p145, %s144, 15
      %s147 = smul.addr %s146, 8
      %s148 = scalar_lea.vmem %s0, %s147
      %p149 = pneg %p35
      %p150 = pneg %p32
      %p151 = pneg %p56
      %p152 = pneg %p53
      %p153 = pneg %p77
      %p154 = pneg %p74
      %p155 = pneg %p103
      %p156 = pneg %p100
      %s157 = smul.u32 8, %s14
      %p158 = scmp.lt.s32.totalorder %s157, 15
      %s159 = scalar_select %p158, %s157, 15
      %s160 = smul.addr %s159, 8
      %s161 = scalar_lea.vmem %s3, %s160
      %s162 = smul.u32 8, %s14
      %p163 = scmp.lt.s32.totalorder %s162, 15
      %s164 = scalar_select %p163, %s162, 15
      %s165 = smul.addr %s164, 8
      %s166 = scalar_lea.vmem %s0, %s165
      %s167 = smul.u32 8, %s14
      %s168 = smul.u32 8, %s14
      %p169 = scmp.lt.s32.totalorder %s168, 15
      %s170 = scalar_select %p169, %s168, 15
      %s171 = smul.addr %s170, 8
      %s172 = scalar_lea.vmem %s3, %s171
      %s173 = smul.u32 8, %s14
      %v174 = vld [vmem:[%s166] sm:$0xff]
      %v175 = vld [vmem:[%s166 + $0x8] sm:$0xff]
      %v176 = vld [vmem:[%s166 + $0x10] sm:$0xff]
      %v177 = vld [vmem:[%s166 + $0x18] sm:$0xff]
      %v178 = vld [vmem:[%s166 + $0x20] sm:$0xff]
      %v179 = vld [vmem:[%s166 + $0x28] sm:$0xff]
      %v180 = vld [vmem:[%s166 + $0x30] sm:$0xff]
      %v181 = vld [vmem:[%s166 + $0x38] sm:$0xff]
      %v182 = vld [vmem:[%s1] sm:$0xff]
      %v183 = vld [vmem:[%s1 + $0x8] sm:$0xff]
      %v184 = vld [vmem:[%s1 + $0x10] sm:$0xff]
      %v185 = vld [vmem:[%s1 + $0x18] sm:$0xff]
      %v186 = vld [vmem:[%s1 + $0x20] sm:$0xff]
      %v187 = vld [vmem:[%s1 + $0x28] sm:$0xff]
      %v188 = vld [vmem:[%s1 + $0x30] sm:$0xff]
      %v189 = vld [vmem:[%s1 + $0x38] sm:$0xff]
      %v190 = vld [vmem:[%s1 + $0x40] sm:$0xff]
      %v191 = vld [vmem:[%s1 + $0x48] sm:$0xff]
      %v192 = vld [vmem:[%s1 + $0x50] sm:$0xff]
      %v193 = vld [vmem:[%s1 + $0x58] sm:$0xff]
      %v194 = vld [vmem:[%s1 + $0x60] sm:$0xff]
      %v195 = vld [vmem:[%s1 + $0x68] sm:$0xff]
      %v196 = vld [vmem:[%s1 + $0x70] sm:$0xff]
      %v197 = vld [vmem:[%s1 + $0x78] sm:$0xff]
      %v198 = vld [vmem:[%s2] sm:$0xff]
      %v199 = vld [vmem:[%s2 + $0x8] sm:$0xff]
      %v200 = vld [vmem:[%s2 + $0x10] sm:$0xff]
      %v201 = vld [vmem:[%s2 + $0x18] sm:$0xff]
      %v202 = vld [vmem:[%s2 + $0x20] sm:$0xff]
      %v203 = vld [vmem:[%s2 + $0x28] sm:$0xff]
      %v204 = vld [vmem:[%s2 + $0x30] sm:$0xff]
      %v205 = vld [vmem:[%s2 + $0x38] sm:$0xff]
      %206 = vmatprep.subr.mxu0 0.0
      %207 = vmatpush1.msra.mxu0 %v197
      %208 = vmatprep.subr.mxu0 0.0
      %209 = vmatpush1.msra.mxu0 %v196
      %210 = vmatprep.subr.mxu0 0.0
      %211 = vmatpush1.msra.mxu0 %v195
      %212 = vmatprep.subr.mxu0 0.0
      %213 = vmatpush1.msra.mxu0 %v194
      %214 = vmatprep.subr.mxu0 0.0
      %215 = vmatpush1.msra.mxu0 %v193
      %216 = vmatprep.subr.mxu0 0.0
      %217 = vmatpush1.msra.mxu0 %v192
      %218 = vmatprep.subr.mxu0 0.0
      %219 = vmatpush1.msra.mxu0 %v191
      %220 = vmatprep.subr.mxu0 0.0
      %221 = vmatpush1.msra.mxu0 %v190
      %222 = vmatprep.subr.mxu0 0.0
      %223 = vmatpush1.msra.mxu0 %v189
      %224 = vmatprep.subr.mxu0 0.0
      %225 = vmatpush1.msra.mxu0 %v188
      %226 = vmatprep.subr.mxu0 0.0
      %227 = vmatpush1.msra.mxu0 %v187
      %228 = vmatprep.subr.mxu0 0.0
      %229 = vmatpush1.msra.mxu0 %v186
      %230 = vmatprep.subr.mxu0 0.0
      %231 = vmatpush1.msra.mxu0 %v185
      %232 = vmatprep.subr.mxu0 0.0
      %233 = vmatpush1.msra.mxu0 %v184
      %234 = vmatprep.subr.mxu0 0.0
      %235 = vmatpush1.msra.mxu0 %v183
      %236 = vmatprep.subr.mxu0 0.0
      %237 = vmatpush1.msra.mxu0 %v182
      %238 = vmatprep.subr.mxu0 0.0
      %239 = vmatpush2.msra.mxu0 0.0
      %240 = vmatprep.subr.mxu0 0.0
      %241 = vmatpush2.msra.mxu0 0.0
      %242 = vmatprep.subr.mxu0 0.0
      %243 = vmatpush2.msra.mxu0 0.0
      %244 = vmatprep.subr.mxu0 0.0
      %245 = vmatpush2.msra.mxu0 0.0
      %246 = vmatprep.subr.mxu0 0.0
      %247 = vmatpush2.msra.mxu0 0.0
      %248 = vmatprep.subr.mxu0 0.0
      %249 = vmatpush2.msra.mxu0 0.0
      %250 = vmatprep.subr.mxu0 0.0
      %251 = vmatpush2.msra.mxu0 0.0
      %252 = vmatprep.subr.mxu0 0.0
      %253 = vmatpush2.msra.mxu0 0.0
      %254 = vmatprep.subr.mxu0 0.0
      %255 = vmatpush2.msra.mxu0 0.0
      %256 = vmatprep.subr.mxu0 0.0
      %257 = vmatpush2.msra.mxu0 0.0
      %258 = vmatprep.subr.mxu0 0.0
      %259 = vmatpush2.msra.mxu0 0.0
      %260 = vmatprep.subr.mxu0 0.0
      %261 = vmatpush2.msra.mxu0 0.0
      %262 = vmatprep.subr.mxu0 0.0
      %263 = vmatpush2.msra.mxu0 0.0
      %264 = vmatprep.subr.mxu0 0.0
      %265 = vmatpush2.msra.mxu0 0.0
      %266 = vmatprep.subr.mxu0 0.0
      %267 = vmatpush2.msra.mxu0 0.0
      %268 = vmatprep.subr.mxu0 0.0
      %269 = vmatpush2.msra.mxu0 0.0
      %270 = vmatprep.mubr.f32.mxu0 0.0
      %271 = vmatmul.mubr.f32.gmra.mxu0 %v174
      %v272 = vpop.f32.mrf.mxu0
      %v273 = vadd.f32 %v198, %v272
      %v274 = vpop.f32.mrf.mxu0
      %275 = vmatprep.mubr.f32.mxu0 0.0
      %276 = vmatmul.mubr.f32.gmra.mxu0 %v175
      %v277 = vpop.f32.mrf.mxu0
      %v278 = vadd.f32 %v199, %v277
      %v279 = vpop.f32.mrf.mxu0
      %280 = vmatprep.mubr.f32.mxu0 0.0
      %281 = vmatmul.mubr.f32.gmra.mxu0 %v176
      %v282 = vpop.f32.mrf.mxu0
      %v283 = vadd.f32 %v200, %v282
      %v284 = vpop.f32.mrf.mxu0
      %285 = vmatprep.mubr.f32.mxu0 0.0
      %286 = vmatmul.mubr.f32.gmra.mxu0 %v177
      %v287 = vpop.f32.mrf.mxu0
      %v288 = vadd.f32 %v201, %v287
      %v289 = vpop.f32.mrf.mxu0
      %290 = vmatprep.mubr.f32.mxu0 0.0
      %291 = vmatmul.mubr.f32.gmra.mxu0 %v178
      %v292 = vpop.f32.mrf.mxu0
      %v293 = vadd.f32 %v202, %v292
      %v294 = vpop.f32.mrf.mxu0
      %295 = vmatprep.mubr.f32.mxu0 0.0
      %296 = vmatmul.mubr.f32.gmra.mxu0 %v179
      %v297 = vpop.f32.mrf.mxu0
      %v298 = vadd.f32 %v203, %v297
      %v299 = vpop.f32.mrf.mxu0
      %300 = vmatprep.mubr.f32.mxu0 0.0
      %301 = vmatmul.mubr.f32.gmra.mxu0 %v180
      %v302 = vpop.f32.mrf.mxu0
      %v303 = vadd.f32 %v204, %v302
      %v304 = vpop.f32.mrf.mxu0
      %305 = vmatprep.mubr.f32.mxu0 0.0
      %306 = vmatmul.mubr.f32.gmra.mxu0 %v181
      %v307 = vpop.f32.mrf.mxu0
      %v308 = vadd.f32 %v205, %v307
      %v309 = vpop.f32.mrf.mxu0
      %310 = vdwg.mxu0
      %311 = vst [vmem:[%s172] sm:$0xff] %v273
      %312 = vst [vmem:[%s172 + $0x8] sm:$0xff] %v278
      %313 = vst [vmem:[%s172 + $0x10] sm:$0xff] %v283
      %314 = vst [vmem:[%s172 + $0x18] sm:$0xff] %v288
      %315 = vst [vmem:[%s172 + $0x20] sm:$0xff] %v293
      %316 = vst [vmem:[%s172 + $0x28] sm:$0xff] %v298
      %317 = vst [vmem:[%s172 + $0x30] sm:$0xff] %v303
      %318 = vst [vmem:[%s172 + $0x38] sm:$0xff] %v308
      %s319 = smul.u32 8, %s14
      %p320 = scmp.lt.s32.totalorder %s319, 15
      %s321 = scalar_select %p320, %s319, 15
      %s322 = smul.addr %s321, 8
      %s323 = scalar_lea.vmem %s3, %s322
      // Predicated region
      $region33: #{patch_embed_super.1} parent=31 // pred_check
        %p324 = pneg %p100
      $region34: #{patch_embed_super.1} parent=31 // pred_check_branch
        %326 = sbr.rel (%p324) target = $region36
      $region35: #{patch_embed_super.1} parent=31 // pred_region
        %s327 = smul.u32 8, %s14
      $region36: #{patch_embed_super.1} parent=31 // pred_fallthru
        _
    $region32: #{patch_embed_super.1} parent=5 // pred_fallthru
      _
    %p328 = scmp.le.s32.totalorder 2, %s9
    // Predicated region
    $region37: #{patch_embed_super.1} parent=5 // pred_check
      %p329 = pneg %p328
    $region38: #{patch_embed_super.1} parent=5 // pred_check_branch
      %331 = sbr.rel (%p329) target = $region40
    $region39: #{patch_embed_super.1} parent=5 // pred_region
      %s332 = ssub.s32 %s9, 2
      // Predicated region
      $region41: #{patch_embed_super.1} parent=39 // pred_check
        %p333 = pneg %p106
      $region42: #{patch_embed_super.1} parent=39 // pred_check_branch
        %335 = sbr.rel (%p333) target = $region44
      $region43: #{patch_embed_super.1} parent=39 // pred_region
        %s336 = smul.u32 8, %s15
        %p337 = scmp.lt.s32.totalorder %s336, 15
        %s338 = scalar_select %p337, %s336, 15
        %s339 = smul.addr %s338, 8
        %s340 = scalar_lea.vmem %s3, %s339
      $region44: #{patch_embed_super.1} parent=39 // pred_fallthru
        _
    $region40: #{patch_embed_super.1} parent=5 // pred_fallthru
      _
  $region6: #{patch_embed_super.1} parent=0 // loop_footer
    %s13 = sadd.s32 1, %s9
  $region7: #{patch_embed_super.1} parent=0 // loop_footer_branch
    %8 = sbr.rel target = $region3
  $region8: #{patch_embed_super.1} parent=0 // loop_exit
    _

</llo_original>
